<compile_context>
chip_gen: v5e
topology: v5e:2x2
jax: 0.10.0
libtpu: 0.0.40
codegen_flags: <defaults>
</compile_context>

<pallas_src>
import math

import jax
import jax.numpy as jnp
from jax import lax
from jax.experimental import pallas as pl
from jax.experimental.pallas import tpu as pltpu

_SQRT_2_OVER_PI = 0.7978845608028654  # sqrt(2/pi), matches torch.sqrt(2 / tensor(pi))
_LN_EPS = 1e-5                        # nn.LayerNorm default


def _round_up(n, m):
    return ((n + m - 1) // m) * m


# ---------------------------------------------------------------------------
# Hardware query / budgets
# ---------------------------------------------------------------------------
def _tpu_vmem_and_chip():
    vmem, name = 0, ""
    try:
        info = pltpu.get_tpu_info()
        vmem = int(getattr(info, "vmem_capacity_bytes", 0) or 0)
        for attr in ("chip_version", "version", "chip_name", "name"):
            v = getattr(info, attr, None)
            if v:
                name = str(v).lower()
                break
    except Exception:   # best-effort query; conservative defaults below
        pass
    return vmem, name


def _vmem_budget(vmem_bytes):
    if vmem_bytes <= 0:
        vmem_bytes = 64 << 20                       # unknown: assume smallest (v7x) VMEM
    if vmem_bytes <= (64 << 20):                    # v7x-class: leave compiler headroom
        return max(vmem_bytes - (12 << 20), 24 << 20)
    # v5e / v6e (128 MiB physical; v5e scoped default is only 16 MiB -> explicit limit below)
    return min(vmem_bytes - (24 << 20), 110 << 20)


# ---------------------------------------------------------------------------
# One-time functional probe for BlockSpec(pipeline_mode=pl.Buffered(1)) support
# ---------------------------------------------------------------------------
_BUFFERED1_OK = None


def _single_buffer_supported():
    global _BUFFERED1_OK
    if _BUFFERED1_OK is not None:
        return _BUFFERED1_OK
    if not hasattr(pl, "Buffered"):
        _BUFFERED1_OK = False
        return False
    try:
        def k(c_ref, x_ref, o_ref):
            @pl.when(pl.program_id(1) == pl.num_programs(1) - 1)
            def _():
                o_ref[...] = x_ref[...] + c_ref[...]

        c = jnp.ones((8, 128), jnp.float32)
        x = jnp.arange(16 * 128, dtype=jnp.float32).reshape(16, 128)
        out = pl.pallas_call(
            k, out_shape=jax.ShapeDtypeStruct((16, 128), jnp.float32),
            grid=(2, 2),
            in_specs=[pl.BlockSpec((8, 128), lambda i, h: (0, 0),
                                   pipeline_mode=pl.Buffered(1)),
                      pl.BlockSpec((8, 128), lambda i, h: (i, 0))],
            out_specs=pl.BlockSpec((8, 128), lambda i, h: (i, 0)),
            compiler_params=pltpu.CompilerParams(
                dimension_semantics=("parallel", "arbitrary")),
        )(c, x)
        _BUFFERED1_OK = bool(jnp.allclose(jax.block_until_ready(out), x + 1.0))
    except Exception:   # deliberate probe: any failure just disables single-buffering
        _BUFFERED1_OK = False
    return _BUFFERED1_OK


# ---------------------------------------------------------------------------
# VMEM-budget-driven tile selection
# ---------------------------------------------------------------------------
def _vmem_need(tm, th, dim_p, x_isz, c_isz, w_isz, wbuf):
    return (4 * tm * dim_p * x_isz                    # x-in + out blocks, double-buffered
            + tm * dim_p * 4                          # f32 accumulator scratch
            + tm * dim_p * c_isz                      # normalized-x scratch (compute dtype)
            + 6 * 8 * dim_p * 4                       # gamma / beta / b2 blocks (sublane-padded)
            + wbuf * (2 * dim_p + 8) * th * w_isz     # W1 + W2 + b1 blocks
            + 2 * tm * th * 4)                        # h / GELU intermediates (f32)


def _select_tiles(M, dim_p, hidden_p_full, x_isz, c_isz, w_isz, budget,
                  wbuf_resident, tm_cap, th_cap):
    tm_top = min(_round_up(M, 8), max(tm_cap, 8))
    cands = sorted({tm_top} | {c for c in (1024, 512, 256, 128, 64, 32, 16, 8) if c < tm_top},
                   reverse=True)
    need = lambda tm, th, wbuf: _vmem_need(tm, th, dim_p, x_isz, c_isz, w_isz, wbuf)

    # 1) whole padded hidden resident in VMEM -> each weight byte is DMA'd exactly once per call
    if th_cap >= hidden_p_full:
        for tm in cands:
            if need(tm, hidden_p_full, wbuf_resident) <= budget:
                return tm, hidden_p_full, 1

    # 2) chunk the hidden axis; prefer the largest row tile (fewest full weight passes)
    for tm in cands:
        base = need(tm, 0, 2)
        per128 = need(tm, 128, 2) - base
        if base >= budget or per128 <= 0:
            continue
        th_max = min(((budget - base) // per128) * 128, th_cap, hidden_p_full)
        if th_max >= 128:
            n_hid = pl.cdiv(hidden_p_full, th_max)
            th = min(_round_up(pl.cdiv(hidden_p_full, n_hid), 128), th_max)
            return tm, th, pl.cdiv(hidden_p_full, th)

    # 3) fallback: minimum tiles (only for extreme dims); vmem_limit will be clipped
    th = min(th_cap, 128)
    return cands[-1], th, pl.cdiv(hidden_p_full, th)


# ---------------------------------------------------------------------------
# Fused  [LayerNorm] -> Linear -> GELU(tanh) -> Linear -> [+residual]  kernel
# grid = (row_tiles, hidden_tiles); hidden axis accumulates into f32 scratch.
# ---------------------------------------------------------------------------
def _ffn_pallas(x, ln_g, ln_b, w1, b1, w2, b2, *, fuse_ln, add_residual,
                compute_dtype=None, tm=None, hidden_tile=None):
    orig_shape = x.shape
    dim = orig_shape[-1]
    hidden = w1.shape[1]
    M = math.prod(orig_shape[:-1])
    x2d = x.reshape(M, dim)

    cdt = jnp.dtype(compute_dtype) if compute_dtype is not None else jnp.dtype(x.dtype)

    vmem_bytes, chip = _tpu_vmem_and_chip()
    budget = _vmem_budget(vmem_bytes)
    is_v5 = any(t in chip for t in ("v5", "tpu5", "5e", "5p"))
    is_v6_plus = any(t in chip for t in ("v6", "tpu6", "6e", "v7", "tpu7", "7x"))

    # Lane rounding: 256-multiples fill the 256x256 MXU on v6e/v7x; 128 on v5e / small dims.
    lane_d = 256 if (is_v6_plus and dim > 128) else 128
    lane_h = 256 if (is_v6_plus and hidden > 128) else 128
    dim_p = _round_up(dim, lane_d)
    hidden_p_full = _round_up(hidden, lane_h)

    use_buf1 = _single_buffer_supported()
    x_isz = jnp.dtype(x.dtype).itemsize
    c_isz = cdt.itemsize

    tm_cap = (256 if is_v5 else 1024) if tm is None else max(_round_up(int(tm), 8), 8)
    th_cap = hidden_p_full if hidden_tile is None else \
        min(hidden_p_full, max(_round_up(int(hidden_tile), 128), 128))

    tm_eff, th, n_hid = _select_tiles(
        M, dim_p, hidden_p_full, x_isz, c_isz, c_isz, budget,
        wbuf_resident=1 if use_buf1 else 2, tm_cap=tm_cap, th_cap=th_cap)

    # v7x megacore: give the "parallel" row axis >= 2 blocks for short sequences (only when
    # weights are resident, so splitting rows does not duplicate weight DMA).
    if tm is None and n_hid == 1 and pl.cdiv(M, tm_eff) == 1 and M >= 16:
        tm_eff = _round_up(pl.cdiv(M, 2), 8)

    n_rows = pl.cdiv(M, tm_eff)
    m_p = n_rows * tm_eff
    hidden_p = n_hid * th

    def pad2(a, r, c):
        pr, pc = r - a.shape[0], c - a.shape[1]
        return a if (pr == 0 and pc == 0) else jnp.pad(a, ((0, pr), (0, pc)))

    # TODO(synk): padded/cast weights could be cached across forward calls; here padding is at
    #             least skipped entirely when the pad widths are zero.
    x_p = pad2(x2d, m_p, dim_p)
    w1_p = pad2(w1.astype(cdt), dim_p, hidden_p)
    b1_p = pad2(b1.reshape(1, hidden), 1, hidden_p)
    w2_p = pad2(w2.astype(cdt), hidden_p, dim_p)
    b2_p = pad2(b2.reshape(1, dim), 1, dim_p)
    if fuse_ln:
        g_p = pad2(ln_g.reshape(1, dim), 1, dim_p)
        bt_p = pad2(ln_b.reshape(1, dim), 1, dim_p)
    else:
        g_p = jnp.zeros((1, dim_p), x.dtype)
        bt_p = jnp.zeros((1, dim_p), x.dtype)

    weights_resident = (n_hid == 1)
    gelu_dtype = jnp.bfloat16 if (cdt == jnp.dtype(jnp.bfloat16) and is_v6_plus) else jnp.float32
    inv_dim = 1.0 / dim
    needs_mask = dim_p != dim

    def kernel(x_ref, g_ref, bta_ref, w1_ref, b1_ref, w2_ref, b2_ref, o_ref,
               acc_ref, xn_ref):
        h_idx = pl.program_id(1)

        @pl.when(h_idx == 0)
        def _init():
            acc_ref[...] = jnp.zeros_like(acc_ref)
            xf = x_ref[...].astype(jnp.float32)
            if fuse_ln:
                mu = jnp.sum(xf, axis=-1, keepdims=True) * inv_dim
                d = xf - mu
                if needs_mask:  # exclude zero-padded lanes from the variance
                    lane = lax.broadcasted_iota(jnp.int32, d.shape, 1)
                    d = jnp.where(lane < dim, d, 0.0)
                var = jnp.sum(d * d, axis=-1, keepdims=True) * inv_dim
                xn = d * lax.rsqrt(var + _LN_EPS)
                xn = xn * g_ref[...].astype(jnp.float32) + bta_ref[...].astype(jnp.float32)
            else:
                xn = xf
            xn_ref[...] = xn.astype(xn_ref.dtype)

        # Linear 1 on this hidden chunk (compute dtype on the MXU, f32 accumulation) + GELU.
        h = jnp.dot(xn_ref[...], w1_ref[...], preferred_element_type=jnp.float32)
        h = h + b1_ref[...].astype(jnp.float32)
        hg = h.astype(gelu_dtype)
        g = 0.5 * hg * (1.0 + jnp.tanh(_SQRT_2_OVER_PI * (hg + 0.044715 * (hg * hg * hg))))
        # Dropout layers -> identity (eval semantics).

        # Linear 2 partial product over this hidden chunk, accumulated in f32.
        acc_ref[...] += jnp.dot(g.astype(w2_ref.dtype), w2_ref[...],
                                preferred_element_type=jnp.float32)

        @pl.when(h_idx == pl.num_programs(1) - 1)
        def _finalize():
            out = acc_ref[...] + b2_ref[...].astype(jnp.float32)
            if add_residual:
                out = out + x_ref[...].astype(jnp.float32)
            o_ref[...] = out.astype(o_ref.dtype)

    def wspec(shape, index_map):
        # Big constant weight blocks: single-buffer to halve their VMEM residency.
        if weights_resident and use_buf1:
            return pl.BlockSpec(shape, index_map, pipeline_mode=pl.Buffered(1))
        return pl.BlockSpec(shape, index_map)

    in_specs = [
        pl.BlockSpec((tm_eff, dim_p), lambda i, h: (i, 0)),   # x (LN input / residual)
        pl.BlockSpec((1, dim_p), lambda i, h: (0, 0)),        # LN gamma
        pl.BlockSpec((1, dim_p), lambda i, h: (0, 0)),        # LN beta
        wspec((dim_p, th), lambda i, h: (0, h)),              # W1
        pl.BlockSpec((1, th), lambda i, h: (0, h)),           # b1
        wspec((th, dim_p), lambda i, h: (h, 0)),              # W2
        pl.BlockSpec((1, dim_p), lambda i, h: (0, 0)),        # b2
    ]
    out_spec = pl.BlockSpec((tm_eff, dim_p), lambda i, h: (i, 0))

    wbuf_used = 1 if (weights_resident and use_buf1) else 2
    est = _vmem_need(tm_eff, th, dim_p, x_isz, c_isz, c_isz, wbuf_used)
    vmem_limit = int(min(max(est + est // 4 + (4 << 20), 16 << 20), budget))

    weight_passes = 1 if weights_resident else n_rows
    cost = pl.CostEstimate(
        flops=int(4 * m_p * dim_p * hidden_p + 10 * m_p * dim_p),
        transcendentals=int(m_p * hidden_p + (m_p if fuse_ln else 0)),
        bytes_accessed=int(2 * m_p * dim_p * x_isz
                           + weight_passes * (w1_p.size + w2_p.size) * c_isz
                           + (b1_p.size + b2_p.size + 2 * dim_p) * 4),
    )

    out_p = pl.pallas_call(
        kernel,
        out_shape=jax.ShapeDtypeStruct((m_p, dim_p), x.dtype),
        grid_spec=pltpu.PrefetchScalarGridSpec(
            num_scalar_prefetch=0,
            grid=(n_rows, n_hid),
            in_specs=in_specs,
            out_specs=out_spec,
            scratch_shapes=[pltpu.VMEM((tm_eff, dim_p), jnp.float32),
                            pltpu.VMEM((tm_eff, dim_p), cdt)],
        ),
        compiler_params=pltpu.CompilerParams(
            dimension_semantics=("parallel", "arbitrary"),   # rows shard across TCs (megacore)
            vmem_limit_bytes=vmem_limit,
        ),
        cost_estimate=cost,
    )(x_p, g_p, bt_p, w1_p, b1_p, w2_p, b2_p)

    return out_p[:M, :dim].reshape(orig_shape)


def feed_forward_pallas(x, w1, b1, w2, b2, *, compute_dtype=None, tm=None, hidden_tile=None):
    """FeedForward(dim, mlp_dim, dropout) forward (eval): GELU_tanh(x@W1+b1)@W2+b2 on the MXU."""
    return _ffn_pallas(x, None, None, w1, b1, w2, b2, fuse_ln=False, add_residual=False,
                       compute_dtype=compute_dtype, tm=tm, hidden_tile=hidden_tile)


def prenorm_ffn_residual_pallas(x, ln_g, ln_b, w1, b1, w2, b2, *, compute_dtype=None,
                                tm=None, hidden_tile=None):
    """Residual(PreNorm(FeedForward)) forward: x + FFN(LayerNorm(x)), fully fused."""
    return _ffn_pallas(x, ln_g, ln_b, w1, b1, w2, b2, fuse_ln=True, add_residual=True,
                       compute_dtype=compute_dtype, tm=tm, hidden_tile=hidden_tile)


# ---------------------------------------------------------------------------
# The rest of the transformer layer (plain JAX, eval semantics) + references.
# ---------------------------------------------------------------------------
def layer_norm(x, gamma, beta, eps=_LN_EPS):
    mu = jnp.mean(x, axis=-1, keepdims=True)
    var = jnp.mean(jnp.square(x - mu), axis=-1, keepdims=True)
    return (x - mu) * lax.rsqrt(var + eps) * gamma + beta


def self_attention(x, w_qkv, w_proj, b_proj, num_heads):
    B, N, C = x.shape
    head_dim = C // num_heads
    scale = head_dim ** -0.5
    qkv = (x @ w_qkv).reshape(B, N, 3, num_heads, head_dim).transpose(2, 0, 3, 1, 4)
    q, k, v = qkv[0], qkv[1], qkv[2]                                  # (B, H, N, hd)
    attn = jax.nn.softmax((q @ jnp.swapaxes(k, -2, -1)) * scale, axis=-1)
    out = (attn @ v).transpose(0, 2, 1, 3).reshape(B, N, C)
    return out @ w_proj + b_proj                                      # attn/proj dropout = identity


def reference_ffn(x, w1, b1, w2, b2):
    h = x @ w1 + b1
    g = 0.5 * h * (1.0 + jnp.tanh(_SQRT_2_OVER_PI * (h + 0.044715 * h ** 3)))
    return g @ w2 + b2


def mm_transformer_forward(x, layers, num_heads, *, use_pallas_ffn=True, compute_dtype=None):
    # mmTransformerModel.forward: x = cross_attention[j](x); x = cross_ffn[j](x)
    for p in layers:
        xn = layer_norm(x, p["ln1_g"], p["ln1_b"])
        x = x + self_attention(xn, p["w_qkv"], p["w_proj"], p["b_proj"], num_heads)
        if use_pallas_ffn:
            x = prenorm_ffn_residual_pallas(x, p["ln2_g"], p["ln2_b"],
                                            p["w1"], p["b1"], p["w2"], p["b2"],
                                            compute_dtype=compute_dtype)
        else:
            xn = layer_norm(x, p["ln2_g"], p["ln2_b"])
            x = x + reference_ffn(xn, p["w1"], p["b1"], p["w2"], p["b2"])
    return x


def init_params(key, depth, dim, mlp_dim):
    layers = []
    for _ in range(depth):
        key, *ks = jax.random.split(key, 8)
        layers.append(dict(
            ln1_g=jnp.ones((dim,), jnp.float32), ln1_b=jnp.zeros((dim,), jnp.float32),
            w_qkv=jax.random.normal(ks[0], (dim, 3 * dim), jnp.float32) / math.sqrt(dim),
            w_proj=jax.random.normal(ks[1], (dim, dim), jnp.float32) / math.sqrt(dim),
            b_proj=jax.random.normal(ks[2], (dim,), jnp.float32) * 0.01,
            ln2_g=jnp.ones((dim,), jnp.float32), ln2_b=jnp.zeros((dim,), jnp.float32),
            w1=jax.random.normal(ks[3], (dim, mlp_dim), jnp.float32) / math.sqrt(dim),
            b1=jax.random.normal(ks[4], (mlp_dim,), jnp.float32) * 0.01,
            w2=jax.random.normal(ks[5], (mlp_dim, dim), jnp.float32) / math.sqrt(mlp_dim),
            b2=jax.random.normal(ks[6], (dim,), jnp.float32) * 0.01,
        ))
    return layers


if __name__ == "__main__":
    # mmTransformerModel(modal_num=2, dim=32, depth=2, heads=8, mlp_dim=64) on x: (B, N, dim)
    B, N, dim, heads, mlp_dim, depth = 2, 8, 32, 8, 64, 2

    root = jax.random.PRNGKey(0)
    kx, kp = jax.random.split(root)
    x = jax.random.normal(kx, (B, N, dim), dtype=jnp.float32)
    params = init_params(kp, depth, dim, mlp_dim)

    # f32 path (module-faithful numerics) vs plain-JAX reference.
    out = jax.block_until_ready(mm_transformer_forward(x, params, heads))
    ref = mm_transformer_forward(x, params, heads, use_pallas_ffn=False)
    assert out.shape == (B, N, dim)
    assert jnp.allclose(out, ref, atol=2e-4, rtol=2e-4), "f32 model output mismatch vs reference"

    # bf16 compute path (native MXU mode): loose tolerance vs f32 reference.
    out_bf16 = jax.block_until_ready(
        mm_transformer_forward(x, params, heads, compute_dtype=jnp.bfloat16))
    assert bool(jnp.all(jnp.isfinite(out_bf16)))
    assert jnp.allclose(out_bf16, ref, atol=5e-2, rtol=5e-2), "bf16 model output mismatch"

    # Standalone FFN kernel check exercising row-tile padding (M % tm != 0) and the chunked
    # hidden-axis accumulator path (hidden_tile forces n_hid > 1).
    kx2, kw1, kb1, kw2, kb2 = jax.random.split(jax.random.PRNGKey(0), 5)
    x2 = jax.random.normal(kx2, (3, 10, 32), dtype=jnp.float32)
    w1 = jax.random.normal(kw1, (32, 256), dtype=jnp.float32) / math.sqrt(32)
    b1 = jax.random.normal(kb1, (256,), dtype=jnp.float32) * 0.01
    w2 = jax.random.normal(kw2, (256, 32), dtype=jnp.float32) / math.sqrt(256)
    b2 = jax.random.normal(kb2, (32,), dtype=jnp.float32) * 0.01
    y = jax.block_until_ready(feed_forward_pallas(x2, w1, b1, w2, b2, tm=8, hidden_tile=128))
    y_ref = reference_ffn(x2, w1, b1, w2, b2)
    assert jnp.allclose(y, y_ref, atol=1e-4, rtol=1e-4), "FFN kernel mismatch vs reference"

    print("KERNEL_OK")
</pallas_src>

<mosaic_0001>
module attributes {stable_mosaic.version = 11 : i64} {
  func.func @k(%arg0: i32, %arg1: i32, %arg2: memref<8x128xf32, #tpu.memory_space<vmem>>, %arg3: memref<8x128xf32, #tpu.memory_space<vmem>>, %arg4: memref<8x128xf32, #tpu.memory_space<vmem>>) attributes {dimension_semantics = [#tpu.dimension_semantics<parallel>, #tpu.dimension_semantics<arbitrary>], iteration_bounds = array<i64: 2, 2>, scalar_prefetch = 0 : i64, scratch_operands = 0 : i64, tpu.core_type = #tpu.core_type<tc>, window_params = [{pipeline_mode = #tpu.pipeline_mode<synchronous>, transform_indices = @transform_0, window_bounds = array<i64: 8, 128>}, {transform_indices = @transform_1, window_bounds = array<i64: 8, 128>}, {transform_indices = @transform_2, window_bounds = array<i64: 8, 128>}]} {
    %c1_i32 = arith.constant 1 : i32
    %0 = arith.cmpi eq, %arg1, %c1_i32 : i32
    %1 = arith.extui %0 : i1 to i32
    %c0_i32 = arith.constant 0 : i32
    %2 = arith.cmpi ne, %1, %c0_i32 : i32
    scf.if %2 {
      %c0 = arith.constant 0 : index
      %c0_0 = arith.constant 0 : index
      %3 = vector.load %arg3[%c0, %c0_0] : memref<8x128xf32, #tpu.memory_space<vmem>>, vector<8x128xf32>
      %c0_1 = arith.constant 0 : index
      %c0_2 = arith.constant 0 : index
      %4 = vector.load %arg2[%c0_1, %c0_2] : memref<8x128xf32, #tpu.memory_space<vmem>>, vector<8x128xf32>
      %5 = arith.addf %3, %4 : vector<8x128xf32>
      %c0_3 = arith.constant 0 : index
      %c0_4 = arith.constant 0 : index
      %6 = vector.load %arg4[%c0_3, %c0_4] : memref<8x128xf32, #tpu.memory_space<vmem>>, vector<8x128xf32>
      tpu.vector_store %arg4[%c0_3, %c0_4], %5 {strides = array<i32>} : memref<8x128xf32, #tpu.memory_space<vmem>>, vector<8x128xf32>,
    } else {
    }
    return
  }
  func.func @transform_0(%arg0: i32, %arg1: i32) -> (i32, i32) {
    %c0_i32 = arith.constant 0 : i32
    %c0_i32_0 = arith.constant 0 : i32
    %c0_i32_1 = arith.constant 0 : i32
    return %c0_i32, %c0_i32_0 : i32, i32
  }
  func.func @transform_1(%arg0: i32, %arg1: i32) -> (i32, i32) {
    %c0_i32 = arith.constant 0 : i32
    %c0_i32_0 = arith.constant 0 : i32
    return %arg0, %c0_i32 : i32, i32
  }
  func.func @transform_2(%arg0: i32, %arg1: i32) -> (i32, i32) {
    %c0_i32 = arith.constant 0 : i32
    %c0_i32_0 = arith.constant 0 : i32
    return %arg0, %c0_i32 : i32, i32
  }
}

module attributes {stable_mosaic.version = 11 : i64} {
  func.func @kernel(%arg0: i32, %arg1: i32, %arg2: memref<8x128xf32, #tpu.memory_space<vmem>>, %arg3: memref<1x128xf32, #tpu.memory_space<vmem>>, %arg4: memref<1x128xf32, #tpu.memory_space<vmem>>, %arg5: memref<128x128xf32, #tpu.memory_space<vmem>>, %arg6: memref<1x128xf32, #tpu.memory_space<vmem>>, %arg7: memref<128x128xf32, #tpu.memory_space<vmem>>, %arg8: memref<1x128xf32, #tpu.memory_space<vmem>>, %arg9: memref<8x128xf32, #tpu.memory_space<vmem>>, %arg10: memref<8x128xf32, #tpu.memory_space<vmem>>, %arg11: memref<8x128xf32, #tpu.memory_space<vmem>>) attributes {dimension_semantics = [#tpu.dimension_semantics<parallel>, #tpu.dimension_semantics<arbitrary>], iteration_bounds = array<i64: 2, 1>, scalar_prefetch = 0 : i64, scratch_operands = 2 : i64, tpu.core_type = #tpu.core_type<tc>, window_params = [{transform_indices = @transform_0, window_bounds = array<i64: 8, 128>}, {pipeline_mode = #tpu.pipeline_mode<synchronous>, transform_indices = @transform_1, window_bounds = array<i64: 1, 128>}, {pipeline_mode = #tpu.pipeline_mode<synchronous>, transform_indices = @transform_2, window_bounds = array<i64: 1, 128>}, {transform_indices = @transform_3, window_bounds = array<i64: 128, 128>}, {transform_indices = @transform_4, window_bounds = array<i64: 1, 128>}, {transform_indices = @transform_5, window_bounds = array<i64: 128, 128>}, {pipeline_mode = #tpu.pipeline_mode<synchronous>, transform_indices = @transform_6, window_bounds = array<i64: 1, 128>}, {transform_indices = @transform_7, window_bounds = array<i64: 8, 128>}]} {
    %c0_i32 = arith.constant 0 : i32
    %0 = arith.cmpi eq, %arg1, %c0_i32 : i32
    %1 = arith.extui %0 : i1 to i32
    %c0_i32_0 = arith.constant 0 : i32
    %2 = arith.cmpi ne, %1, %c0_i32_0 : i32
    scf.if %2 {
      %cst_19 = arith.constant 0.000000e+00 : f32
      %30 = vector.broadcast %cst_19 : f32 to vector<8x128xf32>
      %c0_20 = arith.constant 0 : index
      %c0_21 = arith.constant 0 : index
      %31 = vector.load %arg10[%c0_20, %c0_21] : memref<8x128xf32, #tpu.memory_space<vmem>>, vector<8x128xf32>
      tpu.vector_store %arg10[%c0_20, %c0_21], %30 {strides = array<i32>} : memref<8x128xf32, #tpu.memory_space<vmem>>, vector<8x128xf32>,
      %c0_22 = arith.constant 0 : index
      %c0_23 = arith.constant 0 : index
      %32 = vector.load %arg2[%c0_22, %c0_23] : memref<8x128xf32, #tpu.memory_space<vmem>>, vector<8x128xf32>
      %cst_24 = arith.constant dense<0.000000e+00> : vector<8xf32>
      %33 = vector.multi_reduction <add>, %32, %cst_24 [1] : vector<8x128xf32> to vector<8xf32>
      %34 = vector.shape_cast %33 : vector<8xf32> to vector<8x1xf32>
      %cst_25 = arith.constant 3.125000e-02 : f32
      %35 = vector.broadcast %cst_25 : f32 to vector<8x1xf32>
      %36 = arith.mulf %34, %35 : vector<8x1xf32>
      %37 = vector.broadcast %36 : vector<8x1xf32> to vector<8x128xf32>
      %38 = arith.subf %32, %37 : vector<8x128xf32>
      %39 = tpu.iota {dimensions = array<i32: 1>} : vector<8x128xi32>
      %c32_i32 = arith.constant 32 : i32
      %40 = vector.broadcast %c32_i32 : i32 to vector<8x128xi32>
      %41 = arith.cmpi slt, %39, %40 : vector<8x128xi32>
      %cst_26 = arith.constant 0.000000e+00 : f32
      %42 = vector.broadcast %cst_26 : f32 to vector<8x128xf32>
      %43 = arith.select %41, %38, %42 : vector<8x128xi1>, vector<8x128xf32>
      %44 = arith.mulf %43, %43 : vector<8x128xf32>
      %cst_27 = arith.constant dense<0.000000e+00> : vector<8xf32>
      %45 = vector.multi_reduction <add>, %44, %cst_27 [1] : vector<8x128xf32> to vector<8xf32>
      %46 = vector.shape_cast %45 : vector<8xf32> to vector<8x1xf32>
      %cst_28 = arith.constant 3.125000e-02 : f32
      %47 = vector.broadcast %cst_28 : f32 to vector<8x1xf32>
      %48 = arith.mulf %46, %47 : vector<8x1xf32>
      %cst_29 = arith.constant 9.99999974E-6 : f32
      %49 = vector.broadcast %cst_29 : f32 to vector<8x1xf32>
      %50 = arith.addf %48, %49 : vector<8x1xf32>
      %51 = math.rsqrt %50 : vector<8x1xf32>
      %52 = vector.broadcast %51 : vector<8x1xf32> to vector<8x128xf32>
      %53 = arith.mulf %43, %52 : vector<8x128xf32>
      %c0_30 = arith.constant 0 : index
      %c0_31 = arith.constant 0 : index
      %54 = vector.load %arg3[%c0_30, %c0_31] : memref<1x128xf32, #tpu.memory_space<vmem>>, vector<1x128xf32>
      %55 = vector.broadcast %54 : vector<1x128xf32> to vector<8x128xf32>
      %56 = arith.mulf %53, %55 : vector<8x128xf32>
      %c0_32 = arith.constant 0 : index
      %c0_33 = arith.constant 0 : index
      %57 = vector.load %arg4[%c0_32, %c0_33] : memref<1x128xf32, #tpu.memory_space<vmem>>, vector<1x128xf32>
      %58 = vector.broadcast %57 : vector<1x128xf32> to vector<8x128xf32>
      %59 = arith.addf %56, %58 : vector<8x128xf32>
      %c0_34 = arith.constant 0 : index
      %c0_35 = arith.constant 0 : index
      %60 = vector.load %arg11[%c0_34, %c0_35] : memref<8x128xf32, #tpu.memory_space<vmem>>, vector<8x128xf32>
      tpu.vector_store %arg11[%c0_34, %c0_35], %59 {strides = array<i32>} : memref<8x128xf32, #tpu.memory_space<vmem>>, vector<8x128xf32>,
    } else {
    }
    %c0 = arith.constant 0 : index
    %c0_1 = arith.constant 0 : index
    %3 = vector.load %arg11[%c0, %c0_1] : memref<8x128xf32, #tpu.memory_space<vmem>>, vector<8x128xf32>
    %c0_2 = arith.constant 0 : index
    %c0_3 = arith.constant 0 : index
    %4 = vector.load %arg5[%c0_2, %c0_3] : memref<128x128xf32, #tpu.memory_space<vmem>>, vector<128x128xf32>
    %cst = arith.constant dense<0.000000e+00> : vector<8x128xf32>
    %5 = tpu.matmul %3, %4, %cst {dimension_numbers = #tpu.dot_dimension_numbers<[1], [0], [0], [1], [0, 0, 1, 1], [], []>} : vector<8x128xf32>, vector<128x128xf32>, vector<8x128xf32> -> vector<8x128xf32>
    %c0_4 = arith.constant 0 : index
    %c0_5 = arith.constant 0 : index
    %6 = vector.load %arg6[%c0_4, %c0_5] : memref<1x128xf32, #tpu.memory_space<vmem>>, vector<1x128xf32>
    %7 = vector.broadcast %6 : vector<1x128xf32> to vector<8x128xf32>
    %8 = arith.addf %5, %7 : vector<8x128xf32>
    %cst_6 = arith.constant 5.000000e-01 : f32
    %9 = vector.broadcast %cst_6 : f32 to vector<8x128xf32>
    %10 = arith.mulf %9, %8 : vector<8x128xf32>
    %11 = arith.mulf %8, %8 : vector<8x128xf32>
    %12 = arith.mulf %11, %8 : vector<8x128xf32>
    %cst_7 = arith.constant 4.471500e-02 : f32
    %13 = vector.broadcast %cst_7 : f32 to vector<8x128xf32>
    %14 = arith.mulf %13, %12 : vector<8x128xf32>
    %15 = arith.addf %8, %14 : vector<8x128xf32>
    %cst_8 = arith.constant 0.797884583 : f32
    %16 = vector.broadcast %cst_8 : f32 to vector<8x128xf32>
    %17 = arith.mulf %16, %15 : vector<8x128xf32>
    %18 = math.tanh %17 : vector<8x128xf32>
    %cst_9 = arith.constant 1.000000e+00 : f32
    %19 = vector.broadcast %cst_9 : f32 to vector<8x128xf32>
    %20 = arith.addf %19, %18 : vector<8x128xf32>
    %21 = arith.mulf %10, %20 : vector<8x128xf32>
    %c0_10 = arith.constant 0 : index
    %c0_11 = arith.constant 0 : index
    %22 = vector.load %arg10[%c0_10, %c0_11] : memref<8x128xf32, #tpu.memory_space<vmem>>, vector<8x128xf32>
    %c0_12 = arith.constant 0 : index
    %c0_13 = arith.constant 0 : index
    %23 = vector.load %arg7[%c0_12, %c0_13] : memref<128x128xf32, #tpu.memory_space<vmem>>, vector<128x128xf32>
    %cst_14 = arith.constant dense<0.000000e+00> : vector<8x128xf32>
    %24 = tpu.matmul %21, %23, %cst_14 {dimension_numbers = #tpu.dot_dimension_numbers<[1], [0], [0], [1], [0, 0, 1, 1], [], []>} : vector<8x128xf32>, vector<128x128xf32>, vector<8x128xf32> -> vector<8x128xf32>
    %25 = arith.addf %22, %24 : vector<8x128xf32>
    %c0_15 = arith.constant 0 : index
    %c0_16 = arith.constant 0 : index
    %26 = vector.load %arg10[%c0_15, %c0_16] : memref<8x128xf32, #tpu.memory_space<vmem>>, vector<8x128xf32>
    tpu.vector_store %arg10[%c0_15, %c0_16], %25 {strides = array<i32>} : memref<8x128xf32, #tpu.memory_space<vmem>>, vector<8x128xf32>,
    %c0_i32_17 = arith.constant 0 : i32
    %27 = arith.cmpi eq, %arg1, %c0_i32_17 : i32
    %28 = arith.extui %27 : i1 to i32
    %c0_i32_18 = arith.constant 0 : i32
    %29 = arith.cmpi ne, %28, %c0_i32_18 : i32
    scf.if %29 {
      %c0_19 = arith.constant 0 : index
      %c0_20 = arith.constant 0 : index
      %30 = vector.load %arg10[%c0_19, %c0_20] : memref<8x128xf32, #tpu.memory_space<vmem>>, vector<8x128xf32>
      %c0_21 = arith.constant 0 : index
      %c0_22 = arith.constant 0 : index
      %31 = vector.load %arg8[%c0_21, %c0_22] : memref<1x128xf32, #tpu.memory_space<vmem>>, vector<1x128xf32>
      %32 = vector.broadcast %31 : vector<1x128xf32> to vector<8x128xf32>
      %33 = arith.addf %30, %32 : vector<8x128xf32>
      %c0_23 = arith.constant 0 : index
      %c0_24 = arith.constant 0 : index
      %34 = vector.load %arg2[%c0_23, %c0_24] : memref<8x128xf32, #tpu.memory_space<vmem>>, vector<8x128xf32>
      %35 = arith.addf %33, %34 : vector<8x128xf32>
      %c0_25 = arith.constant 0 : index
      %c0_26 = arith.constant 0 : index
      %36 = vector.load %arg9[%c0_25, %c0_26] : memref<8x128xf32, #tpu.memory_space<vmem>>, vector<8x128xf32>
      tpu.vector_store %arg9[%c0_25, %c0_26], %35 {strides = array<i32>} : memref<8x128xf32, #tpu.memory_space<vmem>>, vector<8x128xf32>,
    } else {
    }
    return
  }
  func.func @transform_0(%arg0: i32, %arg1: i32) -> (i32, i32) {
    %c0_i32 = arith.constant 0 : i32
    %c0_i32_0 = arith.constant 0 : i32
    return %arg0, %c0_i32 : i32, i32
  }
  func.func @transform_1(%arg0: i32, %arg1: i32) -> (i32, i32) {
    %c0_i32 = arith.constant 0 : i32
    %c0_i32_0 = arith.constant 0 : i32
    %c0_i32_1 = arith.constant 0 : i32
    return %c0_i32, %c0_i32_0 : i32, i32
  }
  func.func @transform_2(%arg0: i32, %arg1: i32) -> (i32, i32) {
    %c0_i32 = arith.constant 0 : i32
    %c0_i32_0 = arith.constant 0 : i32
    %c0_i32_1 = arith.constant 0 : i32
    return %c0_i32, %c0_i32_0 : i32, i32
  }
  func.func @transform_3(%arg0: i32, %arg1: i32) -> (i32, i32) {
    %c0_i32 = arith.constant 0 : i32
    %c0_i32_0 = arith.constant 0 : i32
    return %c0_i32, %arg1 : i32, i32
  }
  func.func @transform_4(%arg0: i32, %arg1: i32) -> (i32, i32) {
    %c0_i32 = arith.constant 0 : i32
    %c0_i32_0 = arith.constant 0 : i32
    return %c0_i32, %arg1 : i32, i32
  }
  func.func @transform_5(%arg0: i32, %arg1: i32) -> (i32, i32) {
    %c0_i32 = arith.constant 0 : i32
    %c0_i32_0 = arith.constant 0 : i32
    return %arg1, %c0_i32 : i32, i32
  }
  func.func @transform_6(%arg0: i32, %arg1: i32) -> (i32, i32) {
    %c0_i32 = arith.constant 0 : i32
    %c0_i32_0 = arith.constant 0 : i32
    %c0_i32_1 = arith.constant 0 : i32
    return %c0_i32, %c0_i32_0 : i32, i32
  }
  func.func @transform_7(%arg0: i32, %arg1: i32) -> (i32, i32) {
    %c0_i32 = arith.constant 0 : i32
    %c0_i32_0 = arith.constant 0 : i32
    return %arg0, %c0_i32 : i32, i32
  }
}

</mosaic_0001>

<llo_original>
// kernel: tpu_custom_call.1
$region0: #{tpu_custom_call.1}
  #allocation0 [shape = 'u32[]', space=smem, size = 0x4, offset = 0x4, fixed_abs, tag = 'smem constant byte address 0x4 - core index']
  #allocation1 [shape = 'u32[72,128]{1,0:T(1,128)}', space=vmem, size = 0x9000, scoped, tag = 'internal scratch']
  %s0 = inlined_call_operand.hbm [shape: f32[8,128], index: 0, kind: input, shape index: {}]
  %s1 = inlined_call_operand.hbm [shape: f32[16,128], index: 1, kind: input, shape index: {}]
  %s2 = inlined_call_operand.hbm [shape: f32[16,128], index: 2, kind: output, shape index: {}]
  %s3 = sld [smem:[#allocation0]]
  $region53: #{tpu_custom_call.1} parent=0
    _
  %s5 = ssub.s32 1, %s3
  %s6 = scalar_select 0, %s5, %s3
  $region1: #{tpu_custom_call.1} parent=0
    #allocation2 [shape = 'u8[4096]{0}', space=vmem, size = 0x1000, scoped, tag = 'input window, operand 0, single buffered']
    #allocation3 [shape = 's32[2]{0}', space=sflag, size = 0x8, scoped, tag = 'scoped memory for tpu_custom_call.1']
    #allocation4 [shape = 's32[2]{0}', space=sflag, size = 0x8, scoped, tag = 'scoped memory for tpu_custom_call.1']
    #allocation5 [shape = 'u8[8192]{0}', space=vmem, size = 0x2000, scoped, tag = 'input window, operand 1']
    #allocation6 [shape = 's32[2]{0}', space=sflag, size = 0x8, scoped, tag = 'scoped memory for tpu_custom_call.1']
    #allocation7 [shape = 'u8[8192]{0}', space=vmem, size = 0x2000, scoped, tag = 'output window, operand 0']
    %7 = vsyncpa [#allocation3], 0
    %8 = vsyncpa [#allocation6], 0
    %s9 = scalar_lea.sflag [#allocation6], 1
    %10 = vsyncpa %s9, 0
    %11 = vsyncpa [#allocation4], 0
    %s12 = scalar_lea.sflag [#allocation4], 1
    %13 = vsyncpa %s12, 0
    loop: start=0, step=1, limit=6
    $region2: #{tpu_custom_call.1} parent=1 // loop_pre_header
      _
    $region3: #{tpu_custom_call.1} parent=1 // loop_header
      %s15 = sphi 0, %s19
      %p16 = scmp.ge.s32.totalorder %s15, 6
      %s22 = sphi 0, %s34
      %s23 = sphi 0, %s30
      %s24 = sphi 0, %s22
      %s25 = sphi 0, %s23
      %s26 = sphi 0, %s24
      %s27 = sphi 0, %s25
      %s35 = sphi 0, %s35
      %s37 = sphi 0, %s35
      %s38 = sphi 0, %s37
      %s52 = sphi 0, %s38
      %s58 = sphi 0, %s60
      %s61 = sphi 0, %s58
      %s62 = sphi 0, %s61
      %s78 = sphi 0, %s62
      %s84 = sphi 0, %s86
      %s87 = sphi 0, %s84
      %s88 = sphi 0, %s87
      %s104 = sphi 0, %s88
    $region4: #{tpu_custom_call.1} parent=1 // loop_header_branch
      %18 = sbr.rel (%p16) target = $region8
    $region5: #{tpu_custom_call.1} parent=1 // loop_body
      %s20 = ssub.s32 %s15, 1
      %s21 = ssub.s32 %s15, 2
      %s28 = sadd.s32 1, %s23
      %p29 = scmp.ge.s32.totalorder %s28, 2
      %s30 = scalar_select %p29, 0, %s28
      %s31 = sadd.s32 1, %s22
      %s32 = scalar_select %p29, %s31, %s22
      %p33 = scmp.ge.s32.totalorder %s32, 2
      %s34 = scalar_select %p33, 0, %s32
      %s36 = sadd.s32 %s35, 1
      %p39 = scmp.eq.s32.totalorder %s15, 3
      %p40 = scmp.ne.s32.totalorder %s35, %s37
      %p41 = scmp.eq.s32.totalorder %s15, 0
      %p42 = por %p40, %p41
      %p43 = scmp.ne.s32.totalorder %s35, %s37
      %p44 = scmp.eq.s32.totalorder %s20, 3
      %p45 = por %p43, %p44
      %p46 = scmp.ne.s32.totalorder %s37, %s38
      %p47 = scmp.eq.s32.totalorder %s20, 0
      %p48 = por %p46, %p47
      %p49 = scmp.ne.s32.totalorder %s37, %s38
      %p50 = scmp.eq.s32.totalorder %s21, 3
      %p51 = por %p49, %p50
      %p53 = scmp.ne.s32.totalorder %s38, %s52
      %p54 = scmp.eq.s32.totalorder %s21, 0
      %p55 = por %p53, %p54
      %s56 = ssub.s32 %s22, %s34
      %p57 = scmp.eq.s32.totalorder %s56, 0
      %s59 = sadd.s32 %s58, 1
      %s60 = scalar_select %p57, %s58, %s59
      %p63 = pneg %p57
      %p64 = scmp.eq.s32.totalorder %s15, 3
      %p65 = por %p63, %p64
      %p66 = scmp.ne.s32.totalorder %s58, %s61
      %p67 = scmp.eq.s32.totalorder %s15, 0
      %p68 = por %p66, %p67
      %p69 = scmp.ne.s32.totalorder %s58, %s61
      %p70 = scmp.eq.s32.totalorder %s20, 3
      %p71 = por %p69, %p70
      %p72 = scmp.ne.s32.totalorder %s61, %s62
      %p73 = scmp.eq.s32.totalorder %s20, 0
      %p74 = por %p72, %p73
      %p75 = scmp.ne.s32.totalorder %s61, %s62
      %p76 = scmp.eq.s32.totalorder %s21, 3
      %p77 = por %p75, %p76
      %p79 = scmp.ne.s32.totalorder %s62, %s78
      %p80 = scmp.eq.s32.totalorder %s21, 0
      %p81 = por %p79, %p80
      %s82 = ssub.s32 %s22, %s34
      %p83 = scmp.eq.s32.totalorder %s82, 0
      %s85 = sadd.s32 %s84, 1
      %s86 = scalar_select %p83, %s84, %s85
      %p89 = pneg %p83
      %p90 = scmp.eq.s32.totalorder %s15, 3
      %p91 = por %p89, %p90
      %p92 = scmp.ne.s32.totalorder %s84, %s87
      %p93 = scmp.eq.s32.totalorder %s15, 0
      %p94 = por %p92, %p93
      %p95 = scmp.ne.s32.totalorder %s84, %s87
      %p96 = scmp.eq.s32.totalorder %s20, 3
      %p97 = por %p95, %p96
      %p98 = scmp.ne.s32.totalorder %s87, %s88
      %p99 = scmp.eq.s32.totalorder %s20, 0
      %p100 = por %p98, %p99
      %p101 = scmp.ne.s32.totalorder %s87, %s88
      %p102 = scmp.eq.s32.totalorder %s21, 3
      %p103 = por %p101, %p102
      %p105 = scmp.ne.s32.totalorder %s88, %s104
      %p106 = scmp.eq.s32.totalorder %s21, 0
      %p107 = por %p105, %p106
      %p108 = scmp.le.s32.totalorder 1, %s15
      %p109 = scmp.lt.s32.totalorder %s15, 5
      %p110 = pnand %p108, %p109
      %p111 = pneg %p110
      // Predicated region
      $region9: #{tpu_custom_call.1} parent=5 // pred_check
        _
      $region10: #{tpu_custom_call.1} parent=5 // pred_check_branch
        %113 = sbr.rel (%p110) target = $region12
      $region11: #{tpu_custom_call.1} parent=5 // pred_region
        %s114 = ssub.s32 %s15, 1
        // Predicated region
        $region13: #{tpu_custom_call.1} parent=11 // pred_check
          %p115 = pneg %p48
        $region14: #{tpu_custom_call.1} parent=11 // pred_check_branch
          %117 = sbr.rel (%p115) target = $region16
        $region15: #{tpu_custom_call.1} parent=11 // pred_region
          %119 = vsyncadd [#allocation3], 0
          %s121 = sshll.u32 %s0, 4
          %s122 = int_to_ptr.hbm [resolvable:$true] %s121
          %s123 = sshll.u32 [#allocation2], 4
          %s124 = int_to_ptr.vmem [resolvable:$true] %s123
          %126 = dma.hbm_to_vmem [thread:$0]  %s122, 128, %s124, [#allocation3]
        $region16: #{tpu_custom_call.1} parent=11 // pred_fallthru
          _
      $region12: #{tpu_custom_call.1} parent=5 // pred_fallthru
        _
      %p127 = scmp.lt.s32.totalorder %s15, 4
      // Predicated region
      $region17: #{tpu_custom_call.1} parent=5 // pred_check
        %p128 = pneg %p127
      $region18: #{tpu_custom_call.1} parent=5 // pred_check_branch
        %130 = sbr.rel (%p128) target = $region20
      $region19: #{tpu_custom_call.1} parent=5 // pred_region
        // Predicated region
        $region21: #{tpu_custom_call.1} parent=19 // pred_check
          %p131 = pneg %p68
        $region22: #{tpu_custom_call.1} parent=19 // pred_check_branch
          %133 = sbr.rel (%p131) target = $region24
        $region23: #{tpu_custom_call.1} parent=19 // pred_region
          %s134 = sand.u32 %s58, 1
          %s135 = scalar_lea.sflag [#allocation6], %s134
          %s136 = sand.u32 %s58, 1
          %s137 = smul.addr %s136, 8
          %s138 = scalar_lea.vmem [#allocation5], %s137
          %140 = vsyncadd %s135, 0
          %s141 = smul.addr %s22, 8
          %s142 = scalar_lea.hbm %s1, %s141
          %s144 = sshll.u32 %s142, 4
          %s145 = int_to_ptr.hbm [resolvable:$true] %s144
          %s146 = sshll.u32 %s138, 4
          %s147 = int_to_ptr.vmem [resolvable:$true] %s146
          %149 = dma.hbm_to_vmem [thread:$0]  %s145, 128, %s147, %s135
        $region24: #{tpu_custom_call.1} parent=19 // pred_fallthru
          _
      $region20: #{tpu_custom_call.1} parent=5 // pred_fallthru
        _
      %p150 = scmp.le.s32.totalorder 1, %s15
      %p151 = scmp.lt.s32.totalorder %s15, 5
      %p152 = pnand %p150, %p151
      %p153 = pneg %p152
      // Predicated region
      $region25: #{tpu_custom_call.1} parent=5 // pred_check
        _
      $region26: #{tpu_custom_call.1} parent=5 // pred_check_branch
        %155 = sbr.rel (%p152) target = $region28
      $region27: #{tpu_custom_call.1} parent=5 // pred_region
        %s156 = ssub.s32 %s15, 1
        // Predicated region
        $region29: #{tpu_custom_call.1} parent=27 // pred_check
          %p157 = pneg %p48
        $region30: #{tpu_custom_call.1} parent=27 // pred_check_branch
          %159 = sbr.rel (%p157) target = $region32
        $region31: #{tpu_custom_call.1} parent=27 // pred_region
          %161 = dma.done [#allocation3], 128
        $region32: #{tpu_custom_call.1} parent=27 // pred_fallthru
          _
        %s162 = sand.u32 %s61, 1
        %s163 = scalar_lea.sflag [#allocation6], %s162
        %s164 = sand.u32 %s61, 1
        %s165 = smul.addr %s164, 8
        %s166 = scalar_lea.vmem [#allocation5], %s165
        // Predicated region
        $region33: #{tpu_custom_call.1} parent=27 // pred_check
          %p167 = pneg %p74
        $region34: #{tpu_custom_call.1} parent=27 // pred_check_branch
          %169 = sbr.rel (%p167) target = $region36
        $region35: #{tpu_custom_call.1} parent=27 // pred_region
          %171 = dma.done %s163, 128
        $region36: #{tpu_custom_call.1} parent=27 // pred_fallthru
          _
        %p172 = pneg %p48
        %p173 = pneg %p45
        %s174 = sand.u32 %s61, 1
        %s175 = scalar_lea.sflag [#allocation6], %s174
        %s176 = sand.u32 %s61, 1
        %s177 = smul.addr %s176, 8
        %s178 = scalar_lea.vmem [#allocation5], %s177
        %p179 = pneg %p74
        %p180 = pneg %p71
        %p181 = pneg %p100
        %p182 = pneg %p97
        %s183 = sand.u32 %s87, 1
        %s184 = scalar_lea.sflag [#allocation4], %s183
        %s185 = sand.u32 %s87, 1
        %s186 = smul.addr %s185, 8
        %s187 = scalar_lea.vmem [#allocation7], %s186
        %p188 = scmp.eq.s32.totalorder %s25, 1
        // Predicated region
        $region37: #{tpu_custom_call.1} parent=27 // pred_check
          %p189 = pneg %p188
        $region38: #{tpu_custom_call.1} parent=27 // pred_check_branch
          %191 = sbr.rel (%p189) target = $region40
        $region39: #{tpu_custom_call.1} parent=27 // pred_region
          %v192 = vld [vmem:[%s166] sm:$0xff]
          %v193 = vld [vmem:[#allocation2] sm:$0xff]
          %v194 = vadd.f32 %v192, %v193
          %195 = vst [vmem:[%s187] sm:$0xff] %v194
        $region40: #{tpu_custom_call.1} parent=27 // pred_fallthru
          _
        %s196 = sand.u32 %s87, 1
        %s197 = scalar_lea.sflag [#allocation4], %s196
        %s198 = sand.u32 %s87, 1
        %s199 = smul.addr %s198, 8
        %s200 = scalar_lea.vmem [#allocation7], %s199
        // Predicated region
        $region41: #{tpu_custom_call.1} parent=27 // pred_check
          %p201 = pneg %p97
        $region42: #{tpu_custom_call.1} parent=27 // pred_check_branch
          %203 = sbr.rel (%p201) target = $region44
        $region43: #{tpu_custom_call.1} parent=27 // pred_region
          %205 = vsyncadd %s197, 0
          %s206 = smul.addr %s24, 8
          %s207 = scalar_lea.hbm %s2, %s206
          %s209 = sshll.u32 %s200, 4
          %s210 = int_to_ptr.vmem [resolvable:$true] %s209
          %s211 = sshll.u32 %s207, 4
          %s212 = int_to_ptr.hbm [resolvable:$true] %s211
          %214 = dma.vmem_to_hbm [thread:$0]  %s210, 128, %s212, %s197
        $region44: #{tpu_custom_call.1} parent=27 // pred_fallthru
          _
      $region28: #{tpu_custom_call.1} parent=5 // pred_fallthru
        _
      %p215 = scmp.le.s32.totalorder 2, %s15
      // Predicated region
      $region45: #{tpu_custom_call.1} parent=5 // pred_check
        %p216 = pneg %p215
      $region46: #{tpu_custom_call.1} parent=5 // pred_check_branch
        %218 = sbr.rel (%p216) target = $region48
      $region47: #{tpu_custom_call.1} parent=5 // pred_region
        %s219 = ssub.s32 %s15, 2
        // Predicated region
        $region49: #{tpu_custom_call.1} parent=47 // pred_check
          %p220 = pneg %p103
        $region50: #{tpu_custom_call.1} parent=47 // pred_check_branch
          %222 = sbr.rel (%p220) target = $region52
        $region51: #{tpu_custom_call.1} parent=47 // pred_region
          %s223 = sand.u32 %s88, 1
          %s224 = scalar_lea.sflag [#allocation4], %s223
          %s225 = sand.u32 %s88, 1
          %s226 = smul.addr %s225, 8
          %s227 = scalar_lea.vmem [#allocation7], %s226
          %229 = dma.done %s224, 128
        $region52: #{tpu_custom_call.1} parent=47 // pred_fallthru
          _
      $region48: #{tpu_custom_call.1} parent=5 // pred_fallthru
        _
    $region6: #{tpu_custom_call.1} parent=1 // loop_footer
      %s19 = sadd.s32 1, %s15
    $region7: #{tpu_custom_call.1} parent=1 // loop_footer_branch
      %14 = sbr.rel target = $region3
    $region8: #{tpu_custom_call.1} parent=1 // loop_exit
      _
    %230 = vsyncpa [#allocation3], 1
    %s231 = scalar_lea.sflag [#allocation3], 1
    %232 = vsyncpa %s231, 1
    %233 = vsyncpa [#allocation6], 1
    %s234 = scalar_lea.sflag [#allocation6], 1
    %235 = vsyncpa %s234, 1
    %236 = vsyncpa [#allocation4], 1
    %s237 = scalar_lea.sflag [#allocation4], 1
    %238 = vsyncpa %s237, 1

// kernel: tpu_custom_call.1
$region0: #{tpu_custom_call.1}
  #allocation0 [shape = 'u32[]', space=smem, size = 0x4, offset = 0x4, fixed_abs, tag = 'smem constant byte address 0x4 - core index']
  #allocation1 [shape = 'u32[72,128]{1,0:T(1,128)}', space=vmem, size = 0x9000, scoped, tag = 'internal scratch']
  #allocation2 [shape = 'f32[8,128]{1,0:T(8,128)}', space=vmem, size = 0x1000, scoped, tag = 'scratch operand']
  #allocation3 [shape = 'f32[8,128]{1,0:T(8,128)}', space=vmem, size = 0x1000, scoped, tag = 'scratch operand']
  %s0 = inlined_call_operand.hbm [shape: f32[16,128], index: 0, kind: input, shape index: {}]
  %s1 = inlined_call_operand.hbm [shape: f32[1,128], index: 1, kind: input, shape index: {}]
  %s2 = inlined_call_operand.vmem [shape: f32[1,128], index: 2, kind: input, shape index: {}]
  %s3 = inlined_call_operand.hbm [shape: f32[128,128], index: 3, kind: input, shape index: {}]
  %s4 = inlined_call_operand.vmem [shape: f32[1,128], index: 4, kind: input, shape index: {}]
  %s5 = inlined_call_operand.hbm [shape: f32[128,128], index: 5, kind: input, shape index: {}]
  %s6 = inlined_call_operand.vmem [shape: f32[1,128], index: 6, kind: input, shape index: {}]
  %s7 = inlined_call_operand.hbm [shape: f32[16,128], index: 7, kind: output, shape index: {}]
  %s8 = sld [smem:[#allocation0]]
  $region85: #{tpu_custom_call.1} parent=0
    _
  %s10 = ssub.s32 1, %s8
  %s11 = scalar_select 0, %s10, %s8
  $region1: #{tpu_custom_call.1} parent=0
    #allocation4 [shape = 'u8[8192]{0}', space=vmem, size = 0x2000, scoped, tag = 'input window, operand 0']
    #allocation5 [shape = 's32[2]{0}', space=sflag, size = 0x8, scoped, tag = 'scoped memory for tpu_custom_call.1']
    #allocation6 [shape = 's32[2]{0}', space=sflag, size = 0x8, scoped, tag = 'scoped memory for tpu_custom_call.1']
    #allocation7 [shape = 'u8[512]{0}', space=vmem, size = 0x400, scoped, tag = 'input window, operand 1, single buffered']
    #allocation8 [shape = 's32[1]{0}', space=sflag, size = 0x4, scoped, tag = 'scoped memory for tpu_custom_call.1']
    #allocation9 [shape = 'u8[65536]{0}', space=vmem, size = 0x10000, scoped, tag = 'input window, operand 3, single buffered']
    #allocation10 [shape = 'u8[65536]{0}', space=vmem, size = 0x10000, scoped, tag = 'input window, operand 5, single buffered']
    #allocation11 [shape = 's32[1]{0}', space=sflag, size = 0x4, scoped, tag = 'scoped memory for tpu_custom_call.1']
    #allocation12 [shape = 'u8[8192]{0}', space=vmem, size = 0x2000, scoped, tag = 'output window, operand 0']
    %12 = vsyncpa [#allocation5], 0
    %s13 = scalar_lea.sflag [#allocation5], 1
    %14 = vsyncpa %s13, 0
    %15 = vsyncpa [#allocation8], 0
    %16 = vsyncpa [#allocation11], 0
    %17 = vsyncpa [#allocation6], 0
    %s18 = scalar_lea.sflag [#allocation6], 1
    %19 = vsyncpa %s18, 0
    loop: start=0, step=1, limit=4
    $region2: #{tpu_custom_call.1} parent=1 // loop_pre_header
      _
    $region3: #{tpu_custom_call.1} parent=1 // loop_header
      %s21 = sphi 0, %s25
      %p22 = scmp.ge.s32.totalorder %s21, 4
      %s28 = sphi 0, %s40
      %s29 = sphi 0, %s36
      %s30 = sphi 0, %s28
      %s31 = sphi 0, %s29
      %s32 = sphi 0, %s30
      %s33 = sphi 0, %s31
      %s43 = sphi 0, %s45
      %s46 = sphi 0, %s43
      %s47 = sphi 0, %s46
      %s63 = sphi 0, %s47
      %s67 = sphi 0, %s67
      %s69 = sphi 0, %s67
      %s70 = sphi 0, %s69
      %s84 = sphi 0, %s70
      %s88 = sphi 0, %s88
      %s90 = sphi 0, %s88
      %s91 = sphi 0, %s90
      %s105 = sphi 0, %s91
      %s111 = sphi 0, %s113
      %s114 = sphi 0, %s111
      %s115 = sphi 0, %s114
      %s131 = sphi 0, %s115
      %s137 = sphi 0, %s139
      %s140 = sphi 0, %s137
      %s141 = sphi 0, %s140
      %s157 = sphi 0, %s141
      %s163 = sphi 0, %s165
      %s166 = sphi 0, %s163
      %s167 = sphi 0, %s166
      %s183 = sphi 0, %s167
      %s187 = sphi 0, %s187
      %s189 = sphi 0, %s187
      %s190 = sphi 0, %s189
      %s204 = sphi 0, %s190
      %s210 = sphi 0, %s212
      %s213 = sphi 0, %s210
      %s214 = sphi 0, %s213
      %s230 = sphi 0, %s214
    $region4: #{tpu_custom_call.1} parent=1 // loop_header_branch
      %24 = sbr.rel (%p22) target = $region8
    $region5: #{tpu_custom_call.1} parent=1 // loop_body
      %s26 = ssub.s32 %s21, 1
      %s27 = ssub.s32 %s21, 2
      %s34 = sadd.s32 1, %s29
      %p35 = scmp.ge.s32.totalorder %s34, 1
      %s36 = scalar_select %p35, 0, %s34
      %s37 = sadd.s32 1, %s28
      %s38 = scalar_select %p35, %s37, %s28
      %p39 = scmp.ge.s32.totalorder %s38, 2
      %s40 = scalar_select %p39, 0, %s38
      %s41 = ssub.s32 %s28, %s40
      %p42 = scmp.eq.s32.totalorder %s41, 0
      %s44 = sadd.s32 %s43, 1
      %s45 = scalar_select %p42, %s43, %s44
      %p48 = pneg %p42
      %p49 = scmp.eq.s32.totalorder %s21, 1
      %p50 = por %p48, %p49
      %p51 = scmp.ne.s32.totalorder %s43, %s46
      %p52 = scmp.eq.s32.totalorder %s21, 0
      %p53 = por %p51, %p52
      %p54 = scmp.ne.s32.totalorder %s43, %s46
      %p55 = scmp.eq.s32.totalorder %s26, 1
      %p56 = por %p54, %p55
      %p57 = scmp.ne.s32.totalorder %s46, %s47
      %p58 = scmp.eq.s32.totalorder %s26, 0
      %p59 = por %p57, %p58
      %p60 = scmp.ne.s32.totalorder %s46, %s47
      %p61 = scmp.eq.s32.totalorder %s27, 1
      %p62 = por %p60, %p61
      %p64 = scmp.ne.s32.totalorder %s47, %s63
      %p65 = scmp.eq.s32.totalorder %s27, 0
      %p66 = por %p64, %p65
      %s68 = sadd.s32 %s67, 1
      %p71 = scmp.eq.s32.totalorder %s21, 1
      %p72 = scmp.ne.s32.totalorder %s67, %s69
      %p73 = scmp.eq.s32.totalorder %s21, 0
      %p74 = por %p72, %p73
      %p75 = scmp.ne.s32.totalorder %s67, %s69
      %p76 = scmp.eq.s32.totalorder %s26, 1
      %p77 = por %p75, %p76
      %p78 = scmp.ne.s32.totalorder %s69, %s70
      %p79 = scmp.eq.s32.totalorder %s26, 0
      %p80 = por %p78, %p79
      %p81 = scmp.ne.s32.totalorder %s69, %s70
      %p82 = scmp.eq.s32.totalorder %s27, 1
      %p83 = por %p81, %p82
      %p85 = scmp.ne.s32.totalorder %s70, %s84
      %p86 = scmp.eq.s32.totalorder %s27, 0
      %p87 = por %p85, %p86
      %s89 = sadd.s32 %s88, 1
      %p92 = scmp.eq.s32.totalorder %s21, 1
      %p93 = scmp.ne.s32.totalorder %s88, %s90
      %p94 = scmp.eq.s32.totalorder %s21, 0
      %p95 = por %p93, %p94
      %p96 = scmp.ne.s32.totalorder %s88, %s90
      %p97 = scmp.eq.s32.totalorder %s26, 1
      %p98 = por %p96, %p97
      %p99 = scmp.ne.s32.totalorder %s90, %s91
      %p100 = scmp.eq.s32.totalorder %s26, 0
      %p101 = por %p99, %p100
      %p102 = scmp.ne.s32.totalorder %s90, %s91
      %p103 = scmp.eq.s32.totalorder %s27, 1
      %p104 = por %p102, %p103
      %p106 = scmp.ne.s32.totalorder %s91, %s105
      %p107 = scmp.eq.s32.totalorder %s27, 0
      %p108 = por %p106, %p107
      %s109 = ssub.s32 %s29, %s36
      %p110 = scmp.eq.s32.totalorder %s109, 0
      %s112 = sadd.s32 %s111, 1
      %s113 = scalar_select %p110, %s111, %s112
      %p116 = pneg %p110
      %p117 = scmp.eq.s32.totalorder %s21, 1
      %p118 = por %p116, %p117
      %p119 = scmp.ne.s32.totalorder %s111, %s114
      %p120 = scmp.eq.s32.totalorder %s21, 0
      %p121 = por %p119, %p120
      %p122 = scmp.ne.s32.totalorder %s111, %s114
      %p123 = scmp.eq.s32.totalorder %s26, 1
      %p124 = por %p122, %p123
      %p125 = scmp.ne.s32.totalorder %s114, %s115
      %p126 = scmp.eq.s32.totalorder %s26, 0
      %p127 = por %p125, %p126
      %p128 = scmp.ne.s32.totalorder %s114, %s115
      %p129 = scmp.eq.s32.totalorder %s27, 1
      %p130 = por %p128, %p129
      %p132 = scmp.ne.s32.totalorder %s115, %s131
      %p133 = scmp.eq.s32.totalorder %s27, 0
      %p134 = por %p132, %p133
      %s135 = ssub.s32 %s29, %s36
      %p136 = scmp.eq.s32.totalorder %s135, 0
      %s138 = sadd.s32 %s137, 1
      %s139 = scalar_select %p136, %s137, %s138
      %p142 = pneg %p136
      %p143 = scmp.eq.s32.totalorder %s21, 1
      %p144 = por %p142, %p143
      %p145 = scmp.ne.s32.totalorder %s137, %s140
      %p146 = scmp.eq.s32.totalorder %s21, 0
      %p147 = por %p145, %p146
      %p148 = scmp.ne.s32.totalorder %s137, %s140
      %p149 = scmp.eq.s32.totalorder %s26, 1
      %p150 = por %p148, %p149
      %p151 = scmp.ne.s32.totalorder %s140, %s141
      %p152 = scmp.eq.s32.totalorder %s26, 0
      %p153 = por %p151, %p152
      %p154 = scmp.ne.s32.totalorder %s140, %s141
      %p155 = scmp.eq.s32.totalorder %s27, 1
      %p156 = por %p154, %p155
      %p158 = scmp.ne.s32.totalorder %s141, %s157
      %p159 = scmp.eq.s32.totalorder %s27, 0
      %p160 = por %p158, %p159
      %s161 = ssub.s32 %s29, %s36
      %p162 = scmp.eq.s32.totalorder %s161, 0
      %s164 = sadd.s32 %s163, 1
      %s165 = scalar_select %p162, %s163, %s164
      %p168 = pneg %p162
      %p169 = scmp.eq.s32.totalorder %s21, 1
      %p170 = por %p168, %p169
      %p171 = scmp.ne.s32.totalorder %s163, %s166
      %p172 = scmp.eq.s32.totalorder %s21, 0
      %p173 = por %p171, %p172
      %p174 = scmp.ne.s32.totalorder %s163, %s166
      %p175 = scmp.eq.s32.totalorder %s26, 1
      %p176 = por %p174, %p175
      %p177 = scmp.ne.s32.totalorder %s166, %s167
      %p178 = scmp.eq.s32.totalorder %s26, 0
      %p179 = por %p177, %p178
      %p180 = scmp.ne.s32.totalorder %s166, %s167
      %p181 = scmp.eq.s32.totalorder %s27, 1
      %p182 = por %p180, %p181
      %p184 = scmp.ne.s32.totalorder %s167, %s183
      %p185 = scmp.eq.s32.totalorder %s27, 0
      %p186 = por %p184, %p185
      %s188 = sadd.s32 %s187, 1
      %p191 = scmp.eq.s32.totalorder %s21, 1
      %p192 = scmp.ne.s32.totalorder %s187, %s189
      %p193 = scmp.eq.s32.totalorder %s21, 0
      %p194 = por %p192, %p193
      %p195 = scmp.ne.s32.totalorder %s187, %s189
      %p196 = scmp.eq.s32.totalorder %s26, 1
      %p197 = por %p195, %p196
      %p198 = scmp.ne.s32.totalorder %s189, %s190
      %p199 = scmp.eq.s32.totalorder %s26, 0
      %p200 = por %p198, %p199
      %p201 = scmp.ne.s32.totalorder %s189, %s190
      %p202 = scmp.eq.s32.totalorder %s27, 1
      %p203 = por %p201, %p202
      %p205 = scmp.ne.s32.totalorder %s190, %s204
      %p206 = scmp.eq.s32.totalorder %s27, 0
      %p207 = por %p205, %p206
      %s208 = ssub.s32 %s28, %s40
      %p209 = scmp.eq.s32.totalorder %s208, 0
      %s211 = sadd.s32 %s210, 1
      %s212 = scalar_select %p209, %s210, %s211
      %p215 = pneg %p209
      %p216 = scmp.eq.s32.totalorder %s21, 1
      %p217 = por %p215, %p216
      %p218 = scmp.ne.s32.totalorder %s210, %s213
      %p219 = scmp.eq.s32.totalorder %s21, 0
      %p220 = por %p218, %p219
      %p221 = scmp.ne.s32.totalorder %s210, %s213
      %p222 = scmp.eq.s32.totalorder %s26, 1
      %p223 = por %p221, %p222
      %p224 = scmp.ne.s32.totalorder %s213, %s214
      %p225 = scmp.eq.s32.totalorder %s26, 0
      %p226 = por %p224, %p225
      %p227 = scmp.ne.s32.totalorder %s213, %s214
      %p228 = scmp.eq.s32.totalorder %s27, 1
      %p229 = por %p227, %p228
      %p231 = scmp.ne.s32.totalorder %s214, %s230
      %p232 = scmp.eq.s32.totalorder %s27, 0
      %p233 = por %p231, %p232
      %p234 = scmp.le.s32.totalorder 1, %s21
      %p235 = scmp.lt.s32.totalorder %s21, 3
      %p236 = pnand %p234, %p235
      %p237 = pneg %p236
      // Predicated region
      $region9: #{tpu_custom_call.1} parent=5 // pred_check
        _
      $region10: #{tpu_custom_call.1} parent=5 // pred_check_branch
        %239 = sbr.rel (%p236) target = $region12
      $region11: #{tpu_custom_call.1} parent=5 // pred_region
        %s240 = ssub.s32 %s21, 1
        // Predicated region
        $region13: #{tpu_custom_call.1} parent=11 // pred_check
          %p241 = pneg %p80
        $region14: #{tpu_custom_call.1} parent=11 // pred_check_branch
          %243 = sbr.rel (%p241) target = $region16
        $region15: #{tpu_custom_call.1} parent=11 // pred_region
          %245 = vsyncadd [#allocation8], 0
          %s247 = sshll.u32 %s1, 4
          %s248 = int_to_ptr.hbm [resolvable:$true] %s247
          %s249 = sshll.u32 [#allocation7], 4
          %s250 = int_to_ptr.vmem [resolvable:$true] %s249
          %252 = dma.hbm_to_vmem [thread:$0]  %s248, 16, %s250, [#allocation8]
        $region16: #{tpu_custom_call.1} parent=11 // pred_fallthru
          _
        // Predicated region
        $region17: #{tpu_custom_call.1} parent=11 // pred_check
          %p253 = pneg %p101
        $region18: #{tpu_custom_call.1} parent=11 // pred_check_branch
          %255 = sbr.rel (%p253) target = $region20
        $region19: #{tpu_custom_call.1} parent=11 // pred_region
          _
        $region20: #{tpu_custom_call.1} parent=11 // pred_fallthru
          _
        // Predicated region
        $region21: #{tpu_custom_call.1} parent=11 // pred_check
          %p256 = pneg %p127
        $region22: #{tpu_custom_call.1} parent=11 // pred_check_branch
          %258 = sbr.rel (%p256) target = $region24
        $region23: #{tpu_custom_call.1} parent=11 // pred_region
          %260 = vsyncadd [#allocation8], 0
          %s261 = smul.addr %s31, 8
          %s262 = scalar_lea.hbm %s3, %s261
          %s263 = sshll.u32 %s262, 4
          %s264 = int_to_ptr.hbm [resolvable:$true] %s263
          %s265 = sshll.u32 [#allocation9], 4
          %s266 = int_to_ptr.vmem [resolvable:$true] %s265
          %271 = dma.hbm_to_vmem [thread:$0]  %s264, 2048, %s266, [#allocation8], 128, 128, 8
        $region24: #{tpu_custom_call.1} parent=11 // pred_fallthru
          _
        // Predicated region
        $region25: #{tpu_custom_call.1} parent=11 // pred_check
          %p272 = pneg %p153
        $region26: #{tpu_custom_call.1} parent=11 // pred_check_branch
          %274 = sbr.rel (%p272) target = $region28
        $region27: #{tpu_custom_call.1} parent=11 // pred_region
          %p275 = scmp.lt.s32.totalorder %s31, 0
          %s276 = scalar_select %p275, %s31, 0
          %s277 = scalar_lea.vmem %s4, %s276
        $region28: #{tpu_custom_call.1} parent=11 // pred_fallthru
          _
        // Predicated region
        $region29: #{tpu_custom_call.1} parent=11 // pred_check
          %p278 = pneg %p179
        $region30: #{tpu_custom_call.1} parent=11 // pred_check_branch
          %280 = sbr.rel (%p278) target = $region32
        $region31: #{tpu_custom_call.1} parent=11 // pred_region
          %s281 = smul.u32 16, %s31
          %283 = vsyncadd [#allocation11], 0
          %s284 = smul.addr %s281, 8
          %s285 = scalar_lea.hbm %s5, %s284
          %s286 = sshll.u32 %s285, 4
          %s287 = int_to_ptr.hbm [resolvable:$true] %s286
          %s288 = sshll.u32 [#allocation10], 4
          %s289 = int_to_ptr.vmem [resolvable:$true] %s288
          %294 = dma.hbm_to_vmem [thread:$0]  %s287, 2048, %s289, [#allocation11], 128, 128, 8
        $region32: #{tpu_custom_call.1} parent=11 // pred_fallthru
          _
        // Predicated region
        $region33: #{tpu_custom_call.1} parent=11 // pred_check
          %p295 = pneg %p200
        $region34: #{tpu_custom_call.1} parent=11 // pred_check_branch
          %297 = sbr.rel (%p295) target = $region36
        $region35: #{tpu_custom_call.1} parent=11 // pred_region
          _
        $region36: #{tpu_custom_call.1} parent=11 // pred_fallthru
          _
      $region12: #{tpu_custom_call.1} parent=5 // pred_fallthru
        _
      %p298 = scmp.lt.s32.totalorder %s21, 2
      // Predicated region
      $region37: #{tpu_custom_call.1} parent=5 // pred_check
        %p299 = pneg %p298
      $region38: #{tpu_custom_call.1} parent=5 // pred_check_branch
        %301 = sbr.rel (%p299) target = $region40
      $region39: #{tpu_custom_call.1} parent=5 // pred_region
        // Predicated region
        $region41: #{tpu_custom_call.1} parent=39 // pred_check
          %p302 = pneg %p53
        $region42: #{tpu_custom_call.1} parent=39 // pred_check_branch
          %304 = sbr.rel (%p302) target = $region44
        $region43: #{tpu_custom_call.1} parent=39 // pred_region
          %s305 = sand.u32 %s43, 1
          %s306 = scalar_lea.sflag [#allocation5], %s305
          %s307 = sand.u32 %s43, 1
          %s308 = smul.addr %s307, 8
          %s309 = scalar_lea.vmem [#allocation4], %s308
          %311 = vsyncadd %s306, 0
          %s312 = smul.addr %s28, 8
          %s313 = scalar_lea.hbm %s0, %s312
          %s315 = sshll.u32 %s313, 4
          %s316 = int_to_ptr.hbm [resolvable:$true] %s315
          %s317 = sshll.u32 %s309, 4
          %s318 = int_to_ptr.vmem [resolvable:$true] %s317
          %320 = dma.hbm_to_vmem [thread:$0]  %s316, 128, %s318, %s306
        $region44: #{tpu_custom_call.1} parent=39 // pred_fallthru
          _
      $region40: #{tpu_custom_call.1} parent=5 // pred_fallthru
        _
      %p321 = scmp.le.s32.totalorder 1, %s21
      %p322 = scmp.lt.s32.totalorder %s21, 3
      %p323 = pnand %p321, %p322
      %p324 = pneg %p323
      // Predicated region
      $region45: #{tpu_custom_call.1} parent=5 // pred_check
        _
      $region46: #{tpu_custom_call.1} parent=5 // pred_check_branch
        %326 = sbr.rel (%p323) target = $region48
      $region47: #{tpu_custom_call.1} parent=5 // pred_region
        %s327 = ssub.s32 %s21, 1
        %s328 = sand.u32 %s46, 1
        %s329 = scalar_lea.sflag [#allocation5], %s328
        %s330 = sand.u32 %s46, 1
        %s331 = smul.addr %s330, 8
        %s332 = scalar_lea.vmem [#allocation4], %s331
        // Predicated region
        $region49: #{tpu_custom_call.1} parent=47 // pred_check
          %p333 = pneg %p59
        $region50: #{tpu_custom_call.1} parent=47 // pred_check_branch
          %335 = sbr.rel (%p333) target = $region52
        $region51: #{tpu_custom_call.1} parent=47 // pred_region
          %337 = dma.done %s329, 128
        $region52: #{tpu_custom_call.1} parent=47 // pred_fallthru
          _
        // Predicated region
        $region53: #{tpu_custom_call.1} parent=47 // pred_check
          %p338 = pneg %p80
        $region54: #{tpu_custom_call.1} parent=47 // pred_check_branch
          %340 = sbr.rel (%p338) target = $region56
        $region55: #{tpu_custom_call.1} parent=47 // pred_region
          %342 = dma.done [#allocation8], 16
        $region56: #{tpu_custom_call.1} parent=47 // pred_fallthru
          _
        // Predicated region
        $region57: #{tpu_custom_call.1} parent=47 // pred_check
          %p343 = pneg %p127
        $region58: #{tpu_custom_call.1} parent=47 // pred_check_branch
          %345 = sbr.rel (%p343) target = $region60
        $region59: #{tpu_custom_call.1} parent=47 // pred_region
          %347 = dma.done [#allocation8], 2048
        $region60: #{tpu_custom_call.1} parent=47 // pred_fallthru
          _
        // Predicated region
        $region61: #{tpu_custom_call.1} parent=47 // pred_check
          %p348 = pneg %p179
        $region62: #{tpu_custom_call.1} parent=47 // pred_check_branch
          %350 = sbr.rel (%p348) target = $region64
        $region63: #{tpu_custom_call.1} parent=47 // pred_region
          %352 = dma.done [#allocation11], 2048
        $region64: #{tpu_custom_call.1} parent=47 // pred_fallthru
          _
        %s353 = sand.u32 %s46, 1
        %s354 = scalar_lea.sflag [#allocation5], %s353
        %s355 = sand.u32 %s46, 1
        %s356 = smul.addr %s355, 8
        %s357 = scalar_lea.vmem [#allocation4], %s356
        %p358 = pneg %p59
        %p359 = pneg %p56
        %p360 = pneg %p80
        %p361 = pneg %p77
        %p362 = pneg %p101
        %p363 = pneg %p98
        %p364 = pneg %p127
        %p365 = pneg %p124
        %p366 = scmp.lt.s32.totalorder %s31, 0
        %s367 = scalar_select %p366, %s31, 0
        %s368 = scalar_lea.vmem %s4, %s367
        %p369 = pneg %p153
        %p370 = pneg %p150
        %p371 = pneg %p179
        %p372 = pneg %p176
        %p373 = pneg %p200
        %p374 = pneg %p197
        %p375 = pneg %p226
        %p376 = pneg %p223
        %s377 = sand.u32 %s213, 1
        %s378 = scalar_lea.sflag [#allocation6], %s377
        %s379 = sand.u32 %s213, 1
        %s380 = smul.addr %s379, 8
        %s381 = scalar_lea.vmem [#allocation12], %s380
        %p382 = scmp.lt.s32.totalorder %s31, 0
        %s383 = scalar_select %p382, %s31, 0
        %s384 = scalar_lea.vmem %s4, %s383
        %s385 = smul.u32 16, %s31
        %p386 = scmp.eq.s32.totalorder %s31, 0
        // Predicated region
        $region65: #{tpu_custom_call.1} parent=47 // pred_check
          %p387 = pneg %p386
        $region66: #{tpu_custom_call.1} parent=47 // pred_check_branch
          %389 = sbr.rel (%p387) target = $region68
        $region67: #{tpu_custom_call.1} parent=47 // pred_region
          %390 = vst [vmem:[#allocation2] sm:$0xff] 0.0
          %v391 = vld [vmem:[%s332] sm:$0xff]
          %392 = vadd.xlane.f32.xlu0 %v391
          %v393 = vpop.xlane.xlu0 %392
          %v394 = vmul.f32 %v393, 0.03125
          %v395 = vsub.f32 %v391, %v394
          %v396 = vlaneseq
          %v397 = vand.u32 %v396, 127
          %vm398 = vcmp.lt.s32.totalorder %v397, 32
          %v399 = vsel %vm398, %v395, 0.0
          %v400 = vmul.f32 %v399, %v399
          %401 = vadd.xlane.f32.xlu0 %v400
          %v402 = vpop.xlane.xlu0 %401
          %v403 = vmul.f32 %v402, 0.03125
          %v404 = vadd.f32 %v403, 1e-05
          %v405 = vrsqrt.pop %v404
          %v406 = vmul.f32 %v405, %v404
          %v407 = vmul.f32 %v406, %v405
          %v408 = vmul.f32 0.5, %v407
          %v409 = vsub.f32 1.5, %v408
          %v410 = vmul.f32 %v405, %v409
          %vm411 = vweird.f32 %v404
          %vm412 = vweird.f32 %v405
          %vm413 = vmor %vm411, %vm412
          %v414 = vsel %vm413, %v405, %v410
          %v415 = vmul.f32 %v399, %v414
          %v416 = vld [vmem:[#allocation7] sm:$0x1]
          %v418 = vperm.slane %v416, 0
          %v420 = vmul.f32 %v415, %v418
          %v421 = vld [vmem:[%s2] sm:$0x1]
          %v423 = vperm.slane %v421, 0
          %v425 = vadd.f32 %v420, %v423
          %426 = vst [vmem:[#allocation3] sm:$0xff] %v425
        $region68: #{tpu_custom_call.1} parent=47 // pred_fallthru
          _
        %v427 = vld [vmem:[#allocation3] sm:$0xff]
        %v428 = vld [vmem:[#allocation9] sm:$0xff]
        %v429 = vld [vmem:[#allocation9 + $0x8] sm:$0xff]
        %v430 = vld [vmem:[#allocation9 + $0x10] sm:$0xff]
        %v431 = vld [vmem:[#allocation9 + $0x18] sm:$0xff]
        %v432 = vld [vmem:[#allocation9 + $0x20] sm:$0xff]
        %v433 = vld [vmem:[#allocation9 + $0x28] sm:$0xff]
        %v434 = vld [vmem:[#allocation9 + $0x30] sm:$0xff]
        %v435 = vld [vmem:[#allocation9 + $0x38] sm:$0xff]
        %v436 = vld [vmem:[#allocation9 + $0x40] sm:$0xff]
        %v437 = vld [vmem:[#allocation9 + $0x48] sm:$0xff]
        %v438 = vld [vmem:[#allocation9 + $0x50] sm:$0xff]
        %v439 = vld [vmem:[#allocation9 + $0x58] sm:$0xff]
        %v440 = vld [vmem:[#allocation9 + $0x60] sm:$0xff]
        %v441 = vld [vmem:[#allocation9 + $0x68] sm:$0xff]
        %v442 = vld [vmem:[#allocation9 + $0x70] sm:$0xff]
        %v443 = vld [vmem:[#allocation9 + $0x78] sm:$0xff]
        %v444 = vld [vmem:[%s384] sm:$0x1]
        %v446 = vperm.slane %v444, 0
        %448 = vmatpush.msra.mxu0 %v443
        %449 = vmatpush.msra.mxu0 %v442
        %450 = vmatpush.msra.mxu0 %v441
        %451 = vmatpush.msra.mxu0 %v440
        %452 = vmatpush.msra.mxu0 %v439
        %453 = vmatpush.msra.mxu0 %v438
        %454 = vmatpush.msra.mxu0 %v437
        %455 = vmatpush.msra.mxu0 %v436
        %456 = vmatpush.msra.mxu0 %v435
        %457 = vmatpush.msra.mxu0 %v434
        %458 = vmatpush.msra.mxu0 %v433
        %459 = vmatpush.msra.mxu0 %v432
        %460 = vmatpush.msra.mxu0 %v431
        %461 = vmatpush.msra.mxu0 %v430
        %462 = vmatpush.msra.mxu0 %v429
        %463 = vmatpush.msra.mxu0 %v428
        %464 = vmatmul.f32.gmra.mxu0 %v427
        %v465 = vpop.f32.mrf.mxu0
        %v466 = vadd.f32 %v446, %v465
        %467 = vdwg.mxu0
        %v468 = vmul.f32 %v466, 0.5
        %v469 = vmul.f32 %v466, %v466
        %v470 = vmul.f32 %v469, %v466
        %v471 = vmul.f32 %v470, 0.044715
        %v472 = vadd.f32 %v466, %v471
        %v473 = vmul.f32 %v472, 0.7978846
        %v474 = vtanh.pop %v473
        %v475 = vadd.f32 %v474, 1.0
        %v476 = vmul.f32 %v468, %v475
        %v477 = vld [vmem:[#allocation2] sm:$0xff]
        %v478 = vld [vmem:[#allocation10] sm:$0xff]
        %v479 = vld [vmem:[#allocation10 + $0x8] sm:$0xff]
        %v480 = vld [vmem:[#allocation10 + $0x10] sm:$0xff]
        %v481 = vld [vmem:[#allocation10 + $0x18] sm:$0xff]
        %v482 = vld [vmem:[#allocation10 + $0x20] sm:$0xff]
        %v483 = vld [vmem:[#allocation10 + $0x28] sm:$0xff]
        %v484 = vld [vmem:[#allocation10 + $0x30] sm:$0xff]
        %v485 = vld [vmem:[#allocation10 + $0x38] sm:$0xff]
        %v486 = vld [vmem:[#allocation10 + $0x40] sm:$0xff]
        %v487 = vld [vmem:[#allocation10 + $0x48] sm:$0xff]
        %v488 = vld [vmem:[#allocation10 + $0x50] sm:$0xff]
        %v489 = vld [vmem:[#allocation10 + $0x58] sm:$0xff]
        %v490 = vld [vmem:[#allocation10 + $0x60] sm:$0xff]
        %v491 = vld [vmem:[#allocation10 + $0x68] sm:$0xff]
        %v492 = vld [vmem:[#allocation10 + $0x70] sm:$0xff]
        %v493 = vld [vmem:[#allocation10 + $0x78] sm:$0xff]
        %494 = vmatpush.msra.mxu0 %v493
        %495 = vmatpush.msra.mxu0 %v492
        %496 = vmatpush.msra.mxu0 %v491
        %497 = vmatpush.msra.mxu0 %v490
        %498 = vmatpush.msra.mxu0 %v489
        %499 = vmatpush.msra.mxu0 %v488
        %500 = vmatpush.msra.mxu0 %v487
        %501 = vmatpush.msra.mxu0 %v486
        %502 = vmatpush.msra.mxu0 %v485
        %503 = vmatpush.msra.mxu0 %v484
        %504 = vmatpush.msra.mxu0 %v483
        %505 = vmatpush.msra.mxu0 %v482
        %506 = vmatpush.msra.mxu0 %v481
        %507 = vmatpush.msra.mxu0 %v480
        %508 = vmatpush.msra.mxu0 %v479
        %509 = vmatpush.msra.mxu0 %v478
        %510 = vmatmul.f32.gmra.mxu0 %v476
        %v511 = vpop.f32.mrf.mxu0
        %v512 = vadd.f32 0.0, %v511
        %513 = vdwg.mxu0
        %v514 = vadd.f32 %v477, %v512
        %515 = vst [vmem:[#allocation2] sm:$0xff] %v514
        // Predicated region
        $region69: #{tpu_custom_call.1} parent=47 // pred_check
          %p516 = pneg %p386
        $region70: #{tpu_custom_call.1} parent=47 // pred_check_branch
          %518 = sbr.rel (%p516) target = $region72
        $region71: #{tpu_custom_call.1} parent=47 // pred_region
          %v519 = vld [vmem:[#allocation2] sm:$0xff]
          %v520 = vld [vmem:[%s6] sm:$0x1]
          %v522 = vperm.slane %v520, 0
          %v524 = vadd.f32 %v519, %v522
          %v525 = vld [vmem:[%s332] sm:$0xff]
          %v526 = vadd.f32 %v524, %v525
          %527 = vst [vmem:[%s381] sm:$0xff] %v526
        $region72: #{tpu_custom_call.1} parent=47 // pred_fallthru
          _
        %s528 = sand.u32 %s213, 1
        %s529 = scalar_lea.sflag [#allocation6], %s528
        %s530 = sand.u32 %s213, 1
        %s531 = smul.addr %s530, 8
        %s532 = scalar_lea.vmem [#allocation12], %s531
        // Predicated region
        $region73: #{tpu_custom_call.1} parent=47 // pred_check
          %p533 = pneg %p223
        $region74: #{tpu_custom_call.1} parent=47 // pred_check_branch
          %535 = sbr.rel (%p533) target = $region76
        $region75: #{tpu_custom_call.1} parent=47 // pred_region
          %537 = vsyncadd %s529, 0
          %s538 = smul.addr %s30, 8
          %s539 = scalar_lea.hbm %s7, %s538
          %s541 = sshll.u32 %s532, 4
          %s542 = int_to_ptr.vmem [resolvable:$true] %s541
          %s543 = sshll.u32 %s539, 4
          %s544 = int_to_ptr.hbm [resolvable:$true] %s543
          %546 = dma.vmem_to_hbm [thread:$0]  %s542, 128, %s544, %s529
        $region76: #{tpu_custom_call.1} parent=47 // pred_fallthru
          _
      $region48: #{tpu_custom_call.1} parent=5 // pred_fallthru
        _
      %p547 = scmp.le.s32.totalorder 2, %s21
      // Predicated region
      $region77: #{tpu_custom_call.1} parent=5 // pred_check
        %p548 = pneg %p547
      $region78: #{tpu_custom_call.1} parent=5 // pred_check_branch
        %550 = sbr.rel (%p548) target = $region80
      $region79: #{tpu_custom_call.1} parent=5 // pred_region
        %s551 = ssub.s32 %s21, 2
        // Predicated region
        $region81: #{tpu_custom_call.1} parent=79 // pred_check
          %p552 = pneg %p229
        $region82: #{tpu_custom_call.1} parent=79 // pred_check_branch
          %554 = sbr.rel (%p552) target = $region84
        $region83: #{tpu_custom_call.1} parent=79 // pred_region
          %s555 = sand.u32 %s214, 1
          %s556 = scalar_lea.sflag [#allocation6], %s555
          %s557 = sand.u32 %s214, 1
          %s558 = smul.addr %s557, 8
          %s559 = scalar_lea.vmem [#allocation12], %s558
          %561 = dma.done %s556, 128
        $region84: #{tpu_custom_call.1} parent=79 // pred_fallthru
          _
      $region80: #{tpu_custom_call.1} parent=5 // pred_fallthru
        _
    $region6: #{tpu_custom_call.1} parent=1 // loop_footer
      %s25 = sadd.s32 1, %s21
    $region7: #{tpu_custom_call.1} parent=1 // loop_footer_branch
      %20 = sbr.rel target = $region3
    $region8: #{tpu_custom_call.1} parent=1 // loop_exit
      _
    %562 = vsyncpa [#allocation5], 1
    %s563 = scalar_lea.sflag [#allocation5], 1
    %564 = vsyncpa %s563, 1
    %565 = vsyncpa [#allocation8], 1
    %566 = vsyncpa [#allocation11], 1
    %567 = vsyncpa [#allocation6], 1
    %s568 = scalar_lea.sflag [#allocation6], 1
    %569 = vsyncpa %s568, 1

</llo_original>
